<compile_context>
chip_gen: v7x
topology: tpu7x:2x2x1
jax: 0.10.0
libtpu: 0.0.40
codegen_flags: <defaults>
</compile_context>

<pallas_src>
import functools
import math

import jax
import jax.numpy as jnp
from jax import lax
from jax.experimental import pallas as pl
from jax.experimental.pallas import tpu as pltpu

ENCODER_REGULAR_VTH = 0.999  # unused by the Poisson encoder forward, kept for parity


def _poisson_spike_kernel(thresh_ref, out_ref, *, seed_mix, t_blk, batch):
    """One grid step == one block of t_blk spike timesteps.

    thresh_ref : VMEM (B, N) uint32   24-bit Bernoulli thresholds (hoisted pop_act)
    out_ref    : VMEM (t_blk*B, N)    spikes for this block of timesteps
    """
    tb = pl.program_id(0)
    R, N = out_ref.shape  # R = t_blk * batch

    # Broadcast the (B, N) thresholds over the t_blk timesteps of this block.
    thresh = thresh_ref[...]
    thresh_b = jnp.broadcast_to(thresh[None, :, :], (t_blk, batch, N)).reshape(R, N)

    # Global element counter: row = t_global*B + b, element = row*N + n.
    row = lax.broadcasted_iota(jnp.uint32, (R, N), 0)
    col = lax.broadcasted_iota(jnp.uint32, (R, N), 1)
    base = (tb * R).astype(jnp.uint32)
    ctr = (row + base) * jnp.uint32(N) + col

    # Stateless counter-based PRNG: splitmix32-style finalizer.
    x = ctr + jnp.uint32(seed_mix)
    x = x ^ (x >> 16)
    x = x * jnp.uint32(0x7FEB352D)
    x = x ^ (x >> 15)
    x = x * jnp.uint32(0x846CA68B)
    x = x ^ (x >> 16)

    u24 = x >> 8  # uniform 24-bit integer in [0, 2^24)
    out_ref[...] = (u24 < thresh_b).astype(out_ref.dtype)


def _choose_t_blk(spike_ts, B, N, bytes_per_elem=4, vmem_budget=4 << 20):
    """Pick a timestep block that fits VMEM (double-buffered) on v5e/v6e/v7x."""
    max_t = max(1, vmem_budget // (2 * B * N * bytes_per_elem))
    if max_t >= spike_ts:
        return spike_ts  # single block: out block equals full array, no (8,128) issue
    # Multiple blocks: sublane dim t_blk*B must be a multiple of 8.
    m = 8 // math.gcd(B, 8)
    return max(m, (max_t // m) * m)


def spiking_encoder_poisson_spike(obs, mean, std, spike_ts, seed=0):
    """Pallas forward of SpikingEncoderPoissonSpike.

    obs  : (B, obs_dim) float32
    mean : (obs_dim, pop_dim) float32
    std  : (obs_dim, pop_dim) float32
    returns: (B, obs_dim*pop_dim, spike_ts) float32 of {0., 1.} spikes
    """
    B, obs_dim = obs.shape
    pop_dim = mean.shape[-1]
    N = obs_dim * pop_dim

    # --- Hoisted activation (computed once, outside the time loop) ---------
    obs_f = obs.astype(jnp.float32)[:, :, None]                 # (B, obs_dim, 1)
    mean_f = mean.astype(jnp.float32)[None]                     # (1, obs_dim, pop_dim)
    inv_var = (-0.5 / (std.astype(jnp.float32) ** 2))[None]     # (1, obs_dim, pop_dim)
    diff = obs_f - mean_f
    pop_act = jnp.exp(diff * diff * inv_var).reshape(B, N)      # (B, N), in (0, 1]

    # 24-bit integer Bernoulli threshold; pop_act == 1.0 -> 2^24 (always spikes).
    thresh = (jnp.clip(pop_act, 0.0, 1.0) * jnp.float32(1 << 24)).astype(jnp.uint32)

    # --- Timestep blocking --------------------------------------------------
    t_blk = _choose_t_blk(spike_ts, B, N)
    num_blocks = pl.cdiv(spike_ts, t_blk)
    t_pad = num_blocks * t_blk

    seed_mix = (int(seed) * 0x9E3779B9) & 0xFFFFFFFF

    kernel = functools.partial(
        _poisson_spike_kernel, seed_mix=seed_mix, t_blk=t_blk, batch=B
    )

    out2d = pl.pallas_call(
        kernel,
        out_shape=jax.ShapeDtypeStruct((t_pad * B, N), jnp.float32),
        grid=(num_blocks,),
        in_specs=[pl.BlockSpec((B, N), lambda t: (0, 0))],
        out_specs=pl.BlockSpec((t_blk * B, N), lambda t: (t, 0)),
        compiler_params=pltpu.CompilerParams(
            # every timestep block is independent (stateless counter RNG),
            # so the grid can shard across both TensorCores on v7x.
            dimension_semantics=("parallel",),
        ),
    )(thresh)

    # Back to the PyTorch (B, N, spike_ts) layout.
    out_tbn = out2d.reshape(t_pad, B, N)[:spike_ts]
    return jnp.transpose(out_tbn, (1, 2, 0))


def make_encoder_params(obs_dim, pop_dim, mean_range, std):
    """Deterministic parameter init mirroring the module's __init__."""
    delta_mean = (mean_range[1] - mean_range[0]) / (pop_dim - 1)
    means = mean_range[0] + delta_mean * jnp.arange(pop_dim, dtype=jnp.float32)
    mean = jnp.broadcast_to(means[None, :], (obs_dim, pop_dim))
    std_arr = jnp.full((obs_dim, pop_dim), std, dtype=jnp.float32)
    return mean, std_arr


if __name__ == "__main__":
    # Small shapes consistent with the module's forward.
    batch = 2
    obs_dim = 4
    pop_dim = 8
    spike_ts = 8
    mean_range = (-1.0, 1.0)
    std = 0.5

    key = jax.random.PRNGKey(0)
    obs = jax.random.normal(key, (batch, obs_dim), dtype=jnp.float32)

    mean, std_arr = make_encoder_params(obs_dim, pop_dim, mean_range, std)

    fwd = jax.jit(functools.partial(spiking_encoder_poisson_spike,
                                    spike_ts=spike_ts, seed=42))
    pop_spikes = jax.block_until_ready(fwd(obs, mean, std_arr))

    # Sanity: shape, dtype, binary spikes.
    assert pop_spikes.shape == (batch, obs_dim * pop_dim, spike_ts)
    assert pop_spikes.dtype == jnp.float32
    assert bool(jnp.all((pop_spikes == 0.0) | (pop_spikes == 1.0)))

    # Loose statistical check: overall spike rate ~ mean population activation.
    diff = obs[:, :, None] - mean[None]
    pop_act_ref = jnp.exp(-0.5 * diff * diff / (std_arr[None] ** 2)).reshape(batch, -1)
    rate = float(jnp.mean(pop_spikes))
    target = float(jnp.mean(pop_act_ref))
    assert abs(rate - target) < 0.2, (rate, target)

    print("KERNEL_OK")
</pallas_src>

<mosaic_0001>
module attributes {stable_mosaic.version = 11 : i64} {
  func.func @_poisson_spike_kernel(%arg0: i32, %arg1: memref<2x32xi32, #tpu.memory_space<vmem>>, %arg2: memref<16x32xf32, #tpu.memory_space<vmem>>) attributes {dimension_semantics = [#tpu.dimension_semantics<parallel>], iteration_bounds = array<i64: 1>, scalar_prefetch = 0 : i64, scratch_operands = 0 : i64, tpu.core_type = #tpu.core_type<tc>, window_params = [{pipeline_mode = #tpu.pipeline_mode<synchronous>, transform_indices = @transform_0, window_bounds = array<i64: 2, 32>}, {transform_indices = @transform_1, window_bounds = array<i64: 16, 32>}]} {
    %c0 = arith.constant 0 : index
    %c0_0 = arith.constant 0 : index
    %0 = vector.load %arg1[%c0, %c0_0] : memref<2x32xi32, #tpu.memory_space<vmem>>, vector<2x32xi32>
    %1 = vector.shape_cast %0 : vector<2x32xi32> to vector<1x2x32xi32>
    %2 = vector.shape_cast %1 : vector<1x2x32xi32> to vector<1x2x32xi32>
    %3 = vector.broadcast %2 : vector<1x2x32xi32> to vector<8x2x32xi32>
    %4 = vector.shape_cast %3 : vector<8x2x32xi32> to vector<16x32xi32>
    %5 = tpu.iota {dimensions = array<i32: 0>} : vector<16x32xi32>
    %6 = tpu.iota {dimensions = array<i32: 1>} : vector<16x32xi32>
    %c16_i32 = arith.constant 16 : i32
    %7 = arith.muli %arg0, %c16_i32 : i32
    %8 = vector.broadcast %7 : i32 to vector<16x32xi32>
    %9 = arith.addi %5, %8 : vector<16x32xi32>
    %c32_i32 = arith.constant 32 : i32
    %10 = vector.broadcast %c32_i32 : i32 to vector<16x32xi32>
    %11 = arith.muli %9, %10 : vector<16x32xi32>
    %12 = arith.addi %11, %6 : vector<16x32xi32>
    %c-182847398_i32 = arith.constant -182847398 : i32
    %13 = vector.broadcast %c-182847398_i32 : i32 to vector<16x32xi32>
    %14 = arith.addi %12, %13 : vector<16x32xi32>
    %c16_i32_1 = arith.constant 16 : i32
    %15 = vector.broadcast %c16_i32_1 : i32 to vector<16x32xi32>
    %16 = arith.shrui %14, %15 : vector<16x32xi32>
    %17 = arith.xori %14, %16 : vector<16x32xi32>
    %c2146121005_i32 = arith.constant 2146121005 : i32
    %18 = vector.broadcast %c2146121005_i32 : i32 to vector<16x32xi32>
    %19 = arith.muli %17, %18 : vector<16x32xi32>
    %c15_i32 = arith.constant 15 : i32
    %20 = vector.broadcast %c15_i32 : i32 to vector<16x32xi32>
    %21 = arith.shrui %19, %20 : vector<16x32xi32>
    %22 = arith.xori %19, %21 : vector<16x32xi32>
    %c-2073254261_i32 = arith.constant -2073254261 : i32
    %23 = vector.broadcast %c-2073254261_i32 : i32 to vector<16x32xi32>
    %24 = arith.muli %22, %23 : vector<16x32xi32>
    %c16_i32_2 = arith.constant 16 : i32
    %25 = vector.broadcast %c16_i32_2 : i32 to vector<16x32xi32>
    %26 = arith.shrui %24, %25 : vector<16x32xi32>
    %27 = arith.xori %24, %26 : vector<16x32xi32>
    %c8_i32 = arith.constant 8 : i32
    %28 = vector.broadcast %c8_i32 : i32 to vector<16x32xi32>
    %29 = arith.shrui %27, %28 : vector<16x32xi32>
    %30 = arith.cmpi ult, %29, %4 : vector<16x32xi32>
    %31 = arith.extui %30 : vector<16x32xi1> to vector<16x32xi32>
    %32 = arith.sitofp %31 : vector<16x32xi32> to vector<16x32xf32>
    %c0_3 = arith.constant 0 : index
    %c0_4 = arith.constant 0 : index
    %33 = vector.load %arg2[%c0_3, %c0_4] : memref<16x32xf32, #tpu.memory_space<vmem>>, vector<16x32xf32>
    tpu.vector_store %arg2[%c0_3, %c0_4], %32 {strides = array<i32>} : memref<16x32xf32, #tpu.memory_space<vmem>>, vector<16x32xf32>,
    return
  }
  func.func @transform_0(%arg0: i32) -> (i32, i32) {
    %c0_i32 = arith.constant 0 : i32
    %c0_i32_0 = arith.constant 0 : i32
    %c0_i32_1 = arith.constant 0 : i32
    return %c0_i32, %c0_i32_0 : i32, i32
  }
  func.func @transform_1(%arg0: i32) -> (i32, i32) {
    %c0_i32 = arith.constant 0 : i32
    %c0_i32_0 = arith.constant 0 : i32
    return %arg0, %c0_i32 : i32, i32
  }
}

</mosaic_0001>

<llo_original>
// kernel: spiking_encoder_poisson_spike.1
$region0: #{spiking_encoder_poisson_spike.1}
  #allocation0 [shape = 'u32[]', space=smem, size = 0x4, offset = 0x4, fixed_abs, tag = 'smem constant byte address 0x4 - core index']
  #allocation1 [shape = 'u32[144,128]{1,0:T(1,128)}', space=vmem, size = 0x12000, scoped, tag = 'internal scratch']
  %s0 = inlined_call_operand.vmem [shape: u32[2,32], index: 0, kind: input, shape index: {}]
  %s1 = inlined_call_operand.vmem [shape: f32[16,32], index: 1, kind: output, shape index: {}]
  %s2 = sld [smem:[#allocation0]]
  $region14: #{spiking_encoder_poisson_spike.1} parent=0
    _
  %s4 = ssub.s32 1, %s2
  %s5 = scalar_select 0, %s4, %s2
  // Predicated region
  $region2: #{spiking_encoder_poisson_spike.1} parent=0 // pred_check
    _
  $region3: #{spiking_encoder_poisson_spike.1} parent=0 // pred_check_branch
    %7 = sbr.rel (0) target = $region5
  $region4: #{spiking_encoder_poisson_spike.1} parent=0 // pred_region
    _
  $region5: #{spiking_encoder_poisson_spike.1} parent=0 // pred_fallthru
    _
  %v8 = vld [vmem:[%s0] sm:$0x3]
  %v9 = vlaneseq
  %v10 = vshrl.u32 %v9, 7
  %v11 = vadd.s32 %v10, 8
  %v12 = vlaneseq
  %v13 = vand.u32 %v12, 127
  %s14 = smul.u32 0, 16
  %v15 = vstv %s14
  %v16 = vadd.s32 %v10, %v15
  %v17 = vadd.s32 %v11, %v15
  %v18 = vmul.u32 %v16, 32
  %v19 = vmul.u32 %v17, 32
  %v20 = vadd.s32 %v18, %v13
  %v21 = vadd.s32 %v19, %v13
  %v22 = vadd.s32 %v20, 4112119898
  %v23 = vadd.s32 %v21, 4112119898
  %v24 = vshrl.u32 %v22, 16
  %v25 = vshrl.u32 %v23, 16
  %v26 = vxor.u32 %v22, %v24
  %v27 = vxor.u32 %v23, %v25
  %v28 = vmul.u32 %v26, 2146121005
  %v29 = vmul.u32 %v27, 2146121005
  %v30 = vshrl.u32 %v28, 15
  %v31 = vshrl.u32 %v29, 15
  %v32 = vxor.u32 %v28, %v30
  %v33 = vxor.u32 %v29, %v31
  %v34 = vmul.u32 %v32, 2221713035
  %v35 = vmul.u32 %v33, 2221713035
  %v36 = vshrl.u32 %v34, 16
  %v37 = vshrl.u32 %v35, 16
  %v38 = vxor.u32 %v34, %v36
  %v39 = vxor.u32 %v35, %v37
  %v40 = vshrl.u32 %v38, 8
  %v41 = vshrl.u32 %v39, 8
  %v42 = vcombine.low %v8, %v8
  %v44 = vunpack.c.l.s4 1983009808
  %v45 = vunpack.c.0.s8 %v44
  %v46 = vlaneseq
  %v47 = vshrl.u32 %v46, 7
  %v48 = vsub.s32 %v45, %v47
  %v49 = vrot.slane %v42, %v48
  %v50 = vcombine.low %v49, %v49
  %vm51 = vcmp.lt.u32.totalorder %v40, %v50
  %vm52 = vcmp.lt.u32.totalorder %v41, %v50
  %v53 = vsel %vm51, 1, 0
  %v54 = vsel %vm52, 1, 0
  %v55 = vcvt.s32.f32 %v53
  %v56 = vcvt.s32.f32 %v54
  %vm57 = vcmask 261120
  %58 = vst.msk [vmem:[%s1] sm:$0xff] %vm57, %v55
  %59 = vst.msk [vmem:[%s1 + $0x8] sm:$0xff] %vm57, %v56
  // Predicated region
  $region6: #{spiking_encoder_poisson_spike.1} parent=0 // pred_check
    _
  $region7: #{spiking_encoder_poisson_spike.1} parent=0 // pred_check_branch
    %61 = sbr.rel (0) target = $region9
  $region8: #{spiking_encoder_poisson_spike.1} parent=0 // pred_region
    _
  $region9: #{spiking_encoder_poisson_spike.1} parent=0 // pred_fallthru
    _
  // Predicated region
  $region10: #{spiking_encoder_poisson_spike.1} parent=0 // pred_check
    _
  $region11: #{spiking_encoder_poisson_spike.1} parent=0 // pred_check_branch
    %63 = sbr.rel (0) target = $region13
  $region12: #{spiking_encoder_poisson_spike.1} parent=0 // pred_region
    _
  $region13: #{spiking_encoder_poisson_spike.1} parent=0 // pred_fallthru
    _

</llo_original>
